<compile_context>
chip_gen: v5e
topology: v5e:2x2
jax: 0.10.0
libtpu: 0.0.40
codegen_flags: <defaults>
</compile_context>

<pallas_src>
import collections

import jax
import jax.numpy as jnp
from jax.experimental import pallas as pl
from jax.experimental.pallas import tpu as pltpu

LANES = 128
SUBLANES = 32 // 4  # 8 sublanes per vreg for 32-bit dtypes

_ChipCfg = collections.namedtuple(
    "_ChipCfg", ["max_block_rows", "num_parts", "vmem_limit_bytes"])


def _chip_config() -> _ChipCfg:
    """Generation-aware block size / part split / VMEM limit."""
    default = _ChipCfg(8192, 1, 32 << 20)   # conservative (unknown chip)
    try:
        kind = jax.devices()[0].device_kind.lower()
    except Exception:  # pragma: no cover - defensive
        return default
    if "v7" in kind or "7x" in kind:
        # v7x: 2 TCs/chip, ~3.2 TB/s HBM, 64 MiB VMEM/TC. Bigger blocks amortize
        # the ~0.35us/step overhead; 2-way part split targets the two cores.
        return _ChipCfg(16384, 2, 48 << 20)
    if "v6" in kind:
        # v6e: 1 TC, 128 MiB physical VMEM -> 8 MiB blocks, raised scoped limit.
        return _ChipCfg(16384, 1, 64 << 20)
    if "v5e" in kind or "v5 lite" in kind or "v5lite" in kind:
        # v5e: 1 TC, 16 MiB default scoped VMEM -> keep 4 MiB blocks.
        return _ChipCfg(8192, 1, 32 << 20)
    return default


def _round_up(x: int, m: int) -> int:
    return ((x + m - 1) // m) * m


def _make_sum_kernel(row_block: int, acc_rows: int, n_rows: int, last_rows: int):
    """Kernel: fold each (row_block, 128) input block into a (1, acc_rows, 128)
    per-part f32 accumulator with pure VPU adds (no in-kernel XLU reduction)."""
    chunks = row_block // acc_rows
    ragged = last_rows != row_block  # only the final global block can be ragged

    def _fold(x):
        # (row_block,128) f32 -> (acc_rows,128); leading-axis sum = VPU adds over
        # `acc_rows//8` independent vreg accumulator chains.
        return x.reshape(chunks, acc_rows, LANES).sum(axis=0)

    def kernel(x_ref, o_ref):
        p = pl.program_id(0)
        i = pl.program_id(1)

        # Output block is this part's persistent accumulator (same block index
        # for every step along axis 1): zero it on the first step.
        @pl.when(i == 0)
        def _():
            o_ref[...] = jnp.zeros_like(o_ref)

        if not ragged:
            # TODO(synk): for sub-32-bit inputs this casts the whole block to
            # f32 at once; a chunked fori_loop cast would cut the VMEM temp.
            o_ref[...] += _fold(x_ref[...].astype(jnp.float32))[None]
        else:
            is_last = jnp.logical_and(p == pl.num_programs(0) - 1,
                                      i == pl.num_programs(1) - 1)

            # Fast path: fully-valid interior blocks, no mask work at all.
            @pl.when(jnp.logical_not(is_last))
            def _():
                o_ref[...] += _fold(x_ref[...].astype(jnp.float32))[None]

            # Slow path: only the final (ragged) block pays the iota + select.
            @pl.when(is_last)
            def _():
                x = x_ref[...].astype(jnp.float32)
                row_ids = jax.lax.broadcasted_iota(
                    jnp.int32, (row_block, LANES), 0)
                x = jnp.where(row_ids < last_rows, x, 0.0)
                o_ref[...] += _fold(x)[None]

    return kernel


def sum_loss(x: jax.Array, *, force_pallas: bool = False,
             min_pallas_elems: int = 1 << 18) -> jax.Array:
    """Equivalent of torch.sum(x): scalar sum of all elements."""
    orig_dtype = x.dtype

    if not jnp.issubdtype(orig_dtype, jnp.floating):
        # TODO(synk): torch.sum promotes integer/bool inputs to int64; JAX on TPU
        # defaults to 32-bit ints, so fall back to XLA's reduction for those.
        return jnp.sum(x)

    flat = x.reshape(-1)
    n = flat.shape[0]
    if n == 0:
        return jnp.zeros((), dtype=orig_dtype)

    itemsize = jnp.dtype(orig_dtype).itemsize
    sublanes = SUBLANES * max(1, 4 // itemsize)      # 8 f32 / 16 bf16 / 32 int8
    tile = sublanes * LANES                          # one packed (sublane,128) tile

    # Tile-aligned prefix goes through the kernel; the (< tile)-element tail is
    # summed in the wrapper. No concat / zero-pad -> no extra HBM copy.
    n_main = (n // tile) * tile

    if n_main == 0 or (not force_pallas and n < min_pallas_elems):
        # Tiny input: pallas_call dispatch would dominate -> plain XLA reduction.
        return jnp.sum(flat, dtype=jnp.float32).astype(orig_dtype)

    cfg = _chip_config()

    if n_main < n:
        main, tail = flat[:n_main], flat[n_main:]
    else:
        main, tail = flat, None
    x2d = main.reshape(-1, LANES)
    n_rows = x2d.shape[0]                            # multiple of `sublanes`

    max_rows = cfg.max_block_rows
    num_parts = cfg.num_parts

    if n_rows <= max_rows:
        # One block covering the full array (block_shape == array dims is exempt
        # from the (8,128) divisibility rule), never ragged, no mask emitted.
        row_block, num_blocks = n_rows, 1
    else:
        # Round the block count up to a multiple of num_parts and shrink
        # row_block accordingly -> even split, no phantom-block DMA, no clamp.
        num_blocks = pl.cdiv(n_rows, max_rows)
        if num_parts > 1:
            num_blocks = _round_up(num_blocks, num_parts)
        row_block = _round_up(pl.cdiv(n_rows, num_blocks), sublanes)
        num_blocks = pl.cdiv(n_rows, row_block)

    if num_blocks % num_parts != 0:
        num_parts = 1                                # never issue phantom blocks
    steps = num_blocks // num_parts
    last_rows = n_rows - (num_blocks - 1) * row_block

    # Wide accumulator: 64 rows (8 vregs) when the block allows it, so the
    # per-block add chain is split into independent per-vreg chains.
    acc_rows = next(d for d in (64, 32, 16, 8) if row_block % d == 0)

    kernel = _make_sum_kernel(row_block, acc_rows, n_rows, last_rows)

    bytes_accessed = n_main * itemsize + num_parts * acc_rows * LANES * 4

    partials = pl.pallas_call(
        kernel,
        out_shape=jax.ShapeDtypeStruct((num_parts, acc_rows, LANES), jnp.float32),
        grid_spec=pltpu.PrefetchScalarGridSpec(
            num_scalar_prefetch=0,
            grid=(num_parts, steps),
            in_specs=[pl.BlockSpec((row_block, LANES),
                                   lambda p, i: (p * steps + i, 0))],
            out_specs=pl.BlockSpec((1, acc_rows, LANES), lambda p, i: (p, 0, 0)),
        ),
        compiler_params=pltpu.CompilerParams(
            # TODO(synk): if xprof shows the part axis is not sharded across the
            # two v7x TensorCores, switch to (pltpu.CORE_PARALLEL, "arbitrary")
            # or pl.core_map over create_tensorcore_mesh.
            dimension_semantics=("parallel", "arbitrary"),
            vmem_limit_bytes=cfg.vmem_limit_bytes,
        ),
        cost_estimate=pl.CostEstimate(
            flops=n_main, transcendentals=0, bytes_accessed=bytes_accessed),
    )(x2d)

    # Single tiny final cross-lane/sublane reduce (num_parts x acc_rows x 128).
    total = jnp.sum(partials)
    if tail is not None:
        total = total + jnp.sum(tail, dtype=jnp.float32)
    return total.astype(orig_dtype)


def _check(out, ref, n_elems, extra_atol=0.0):
    tol = 1e-6 * n_elems + 1e-3 + extra_atol
    assert jnp.allclose(out.astype(jnp.float32), ref.astype(jnp.float32),
                        atol=tol), (out, ref, tol)


if __name__ == "__main__":
    key = jax.random.PRNGKey(0)
    k1, k2, k3, k4 = jax.random.split(key, 4)

    # Spec input (NCHW 2x4x16x16). Force the Pallas path: the default wrapper
    # bypasses the kernel for tiny inputs per the perf review.
    x = jax.random.normal(k1, (2, 4, 16, 16), dtype=jnp.float32)
    out = sum_loss(x, force_pallas=True)
    jax.block_until_ready(out)
    _check(out, jnp.sum(x), x.size)

    # Default path (tiny-input bypass) must agree too.
    _check(sum_loss(x), jnp.sum(x), x.size)

    # Ragged size: exercises the wrapper-side tail sum (no pad copy, no concat).
    y = jax.random.normal(k2, (517, 263), dtype=jnp.float32)
    _check(sum_loss(y, force_pallas=True), jnp.sum(y), y.size)

    # Multi-block streaming case: exercises the grid loop + gated last-block mask.
    z = jax.random.normal(k3, (17, 1000, 128), dtype=jnp.float32)
    _check(sum_loss(z), jnp.sum(z), z.size)

    # bf16: dtype-aware packed tile + f32 in-kernel accumulation.
    w = jax.random.normal(k4, (64, 1024), dtype=jnp.float32).astype(jnp.bfloat16)
    ref_w = jnp.sum(w.astype(jnp.float32))
    _check(sum_loss(w, force_pallas=True), ref_w,
           w.size, extra_atol=abs(float(ref_w)) * 0.01 + 1.0)

    print("KERNEL_OK")
</pallas_src>

<mosaic_0001>
module attributes {stable_mosaic.version = 11 : i64} {
  func.func @kernel(%arg0: i32, %arg1: i32, %arg2: memref<16x128xf32, #tpu.memory_space<vmem>>, %arg3: memref<1x16x128xf32, #tpu.memory_space<vmem>>) attributes {dimension_semantics = [#tpu.dimension_semantics<parallel>, #tpu.dimension_semantics<arbitrary>], iteration_bounds = array<i64: 1, 1>, scalar_prefetch = 0 : i64, scratch_operands = 0 : i64, tpu.core_type = #tpu.core_type<tc>, window_params = [{transform_indices = @transform_0, window_bounds = array<i64: 16, 128>}, {transform_indices = @transform_1, window_bounds = array<i64: 1, 16, 128>}]} {
    %c0_i32 = arith.constant 0 : i32
    %0 = arith.cmpi eq, %arg1, %c0_i32 : i32
    %1 = arith.extui %0 : i1 to i32
    %c0_i32_0 = arith.constant 0 : i32
    %2 = arith.cmpi ne, %1, %c0_i32_0 : i32
    scf.if %2 {
      %cst_8 = arith.constant 0.000000e+00 : f32
      %10 = vector.broadcast %cst_8 : f32 to vector<1x16x128xf32>
      %c0_9 = arith.constant 0 : index
      %c0_10 = arith.constant 0 : index
      %c0_11 = arith.constant 0 : index
      %11 = vector.load %arg3[%c0_9, %c0_10, %c0_11] : memref<1x16x128xf32, #tpu.memory_space<vmem>>, vector<1x16x128xf32>
      tpu.vector_store %arg3[%c0_9, %c0_10, %c0_11], %10 {strides = array<i32>} : memref<1x16x128xf32, #tpu.memory_space<vmem>>, vector<1x16x128xf32>,
    } else {
    }
    %c0 = arith.constant 0 : index
    %c0_1 = arith.constant 0 : index
    %c0_2 = arith.constant 0 : index
    %3 = vector.load %arg3[%c0, %c0_1, %c0_2] : memref<1x16x128xf32, #tpu.memory_space<vmem>>, vector<1x16x128xf32>
    %c0_3 = arith.constant 0 : index
    %c0_4 = arith.constant 0 : index
    %4 = vector.load %arg2[%c0_3, %c0_4] : memref<16x128xf32, #tpu.memory_space<vmem>>, vector<16x128xf32>
    %5 = vector.shape_cast %4 : vector<16x128xf32> to vector<1x16x128xf32>
    %cst = arith.constant dense<0.000000e+00> : vector<16x128xf32>
    %6 = vector.multi_reduction <add>, %5, %cst [0] : vector<1x16x128xf32> to vector<16x128xf32>
    %7 = vector.shape_cast %6 : vector<16x128xf32> to vector<1x16x128xf32>
    %8 = arith.addf %3, %7 : vector<1x16x128xf32>
    %c0_5 = arith.constant 0 : index
    %c0_6 = arith.constant 0 : index
    %c0_7 = arith.constant 0 : index
    %9 = vector.load %arg3[%c0_5, %c0_6, %c0_7] : memref<1x16x128xf32, #tpu.memory_space<vmem>>, vector<1x16x128xf32>
    tpu.vector_store %arg3[%c0_5, %c0_6, %c0_7], %8 {strides = array<i32>} : memref<1x16x128xf32, #tpu.memory_space<vmem>>, vector<1x16x128xf32>,
    return
  }
  func.func @transform_0(%arg0: i32, %arg1: i32) -> (i32, i32) {
    %c1_i32 = arith.constant 1 : i32
    %0 = arith.muli %arg0, %c1_i32 : i32
    %1 = arith.addi %0, %arg1 : i32
    %c0_i32 = arith.constant 0 : i32
    %c0_i32_0 = arith.constant 0 : i32
    return %1, %c0_i32 : i32, i32
  }
  func.func @transform_1(%arg0: i32, %arg1: i32) -> (i32, i32, i32) {
    %c0_i32 = arith.constant 0 : i32
    %c0_i32_0 = arith.constant 0 : i32
    %c0_i32_1 = arith.constant 0 : i32
    return %arg0, %c0_i32, %c0_i32_0 : i32, i32, i32
  }
}

</mosaic_0001>

<llo_original>
// kernel: tpu_custom_call.1
$region0: #{tpu_custom_call.1}
  #allocation0 [shape = 'u32[]', space=smem, size = 0x4, offset = 0x4, fixed_abs, tag = 'smem constant byte address 0x4 - core index']
  #allocation1 [shape = 'u32[72,128]{1,0:T(1,128)}', space=vmem, size = 0x9000, scoped, tag = 'internal scratch']
  %s0 = inlined_call_operand.hbm [shape: f32[16,128], index: 0, kind: input, shape index: {}]
  %s1 = inlined_call_operand.hbm [shape: f32[1,16,128], index: 1, kind: output, shape index: {}]
  %s2 = sld [smem:[#allocation0]]
  $region22: #{tpu_custom_call.1} parent=0
    _
  %s4 = ssub.s32 1, %s2
  %s5 = scalar_select 0, %s4, %s2
  $region1: #{tpu_custom_call.1} parent=0
    #allocation2 [shape = 'u8[8192]{0}', space=vmem, size = 0x2000, scoped, tag = 'input window, operand 0, single buffered']
    #allocation3 [shape = 's32[1]{0}', space=sflag, size = 0x4, scoped, tag = 'scoped memory for tpu_custom_call.1']
    #allocation4 [shape = 's32[1]{0}', space=sflag, size = 0x4, scoped, tag = 'scoped memory for tpu_custom_call.1']
    #allocation5 [shape = 'u8[8192]{0}', space=vmem, size = 0x2000, scoped, tag = 'output window, operand 0, single buffered']
    %6 = vsyncpa [#allocation3], 0
    %7 = vsyncpa [#allocation4], 0
    // Predicated region
    $region2: #{tpu_custom_call.1} parent=1 // pred_check
      _
    $region3: #{tpu_custom_call.1} parent=1 // pred_check_branch
      %9 = sbr.rel (0) target = $region5
    $region4: #{tpu_custom_call.1} parent=1 // pred_region
      %s10 = sadd.s32 0, 0
      %s11 = smul.u32 2, %s10
      %13 = vsyncadd [#allocation3], 0
      %s14 = smul.addr %s11, 8
      %s15 = scalar_lea.hbm %s0, %s14
      %s16 = sshll.u32 %s15, 4
      %s17 = int_to_ptr.hbm [resolvable:$true] %s16
      %s18 = sshll.u32 [#allocation2], 4
      %s19 = int_to_ptr.vmem [resolvable:$true] %s18
      %24 = dma.hbm_to_vmem [thread:$0]  %s17, 256, %s19, [#allocation3], 128, 128, 8
    $region5: #{tpu_custom_call.1} parent=1 // pred_fallthru
      _
    // Predicated region
    $region6: #{tpu_custom_call.1} parent=1 // pred_check
      _
    $region7: #{tpu_custom_call.1} parent=1 // pred_check_branch
      %26 = sbr.rel (0) target = $region9
    $region8: #{tpu_custom_call.1} parent=1 // pred_region
      %28 = dma.done [#allocation3], 256
    $region9: #{tpu_custom_call.1} parent=1 // pred_fallthru
      _
    %s29 = sadd.s32 0, 0
    %s30 = smul.u32 2, %s29
    %p31 = scmp.eq.s32.totalorder 0, 0
    // Predicated region
    $region10: #{tpu_custom_call.1} parent=1 // pred_check
      %p32 = pneg %p31
    $region11: #{tpu_custom_call.1} parent=1 // pred_check_branch
      %34 = sbr.rel (%p32) target = $region13
    $region12: #{tpu_custom_call.1} parent=1 // pred_region
      %35 = vst [vmem:[#allocation5] sm:$0xff] 0.0
      %36 = vst [vmem:[#allocation5 + $0x8] sm:$0xff] 0.0
    $region13: #{tpu_custom_call.1} parent=1 // pred_fallthru
      _
    %v37 = vld [vmem:[#allocation5] sm:$0xff]
    %v38 = vld [vmem:[#allocation5 + $0x8] sm:$0xff]
    %v39 = vld [vmem:[#allocation2] sm:$0xff]
    %v40 = vld [vmem:[#allocation2 + $0x8] sm:$0xff]
    %v41 = vadd.f32 %v39, 0.0
    %v42 = vadd.f32 %v40, 0.0
    %v43 = vadd.f32 %v37, %v41
    %v44 = vadd.f32 %v38, %v42
    %45 = vst [vmem:[#allocation5] sm:$0xff] %v43
    %46 = vst [vmem:[#allocation5 + $0x8] sm:$0xff] %v44
    // Predicated region
    $region14: #{tpu_custom_call.1} parent=1 // pred_check
      _
    $region15: #{tpu_custom_call.1} parent=1 // pred_check_branch
      %48 = sbr.rel (0) target = $region17
    $region16: #{tpu_custom_call.1} parent=1 // pred_region
      %50 = vsyncadd [#allocation4], 0
      %s51 = sshll.u32 [#allocation5], 4
      %s52 = int_to_ptr.vmem [resolvable:$true] %s51
      %s53 = sshll.u32 %s1, 4
      %s54 = int_to_ptr.hbm [resolvable:$true] %s53
      %59 = dma.vmem_to_hbm [thread:$0]  %s52, 256, %s54, [#allocation4], 128, 128, 8
    $region17: #{tpu_custom_call.1} parent=1 // pred_fallthru
      _
    // Predicated region
    $region18: #{tpu_custom_call.1} parent=1 // pred_check
      _
    $region19: #{tpu_custom_call.1} parent=1 // pred_check_branch
      %61 = sbr.rel (0) target = $region21
    $region20: #{tpu_custom_call.1} parent=1 // pred_region
      %63 = dma.done [#allocation4], 256
    $region21: #{tpu_custom_call.1} parent=1 // pred_fallthru
      _
    %64 = vsyncpa [#allocation3], 1
    %65 = vsyncpa [#allocation4], 1

</llo_original>
